<compile_context>
chip_gen: v5e
topology: v5e:2x2
jax: 0.10.0
libtpu: 0.0.40
codegen_flags: <defaults>
</compile_context>

<pallas_src>
import functools
import math

import jax
import jax.numpy as jnp
from jax.experimental import pallas as pl
from jax.experimental.pallas import tpu as pltpu


def _softplus(x):
    # Numerically stable softplus (EUP exp + log).
    return jnp.logaddexp(x, 0.0)


def _round_up(x, m):
    return (x + m - 1) // m * m


def _pick_tile(padded, cap=512):
    """Largest multiple of 128 that divides `padded` and is <= cap."""
    t = min(cap, padded)
    while padded % t:
        t -= 128
    return t


# --------------------------------------------------------------------------
# Forward kernel: out = tanh(x @ W_mu + sqrt(x^2 @ std_w^2) * eps_W
#                            + b_mu + std_b * eps_b)
# Grid = (j: D_out tiles [parallel], k: D_in reduction [arbitrary]).
# --------------------------------------------------------------------------
def _bayes_fwd_kernel(x_ref, wmu_ref, wrho_ref, bmu_ref, brho_ref,
                      epsw_ref, epsb_ref, out_ref, acc_mu_ref, acc_var_ref):
    k = pl.program_id(1)

    @pl.when(k == 0)
    def _init():
        acc_mu_ref[...] = jnp.zeros_like(acc_mu_ref)
        acc_var_ref[...] = jnp.zeros_like(acc_var_ref)

    x = x_ref[...]                                   # (Bp, tk)
    std_w = 1e-06 + _softplus(wrho_ref[...])         # (tk, tn)

    acc_mu_ref[...] += jnp.dot(x, wmu_ref[...],
                               preferred_element_type=jnp.float32)
    acc_var_ref[...] += jnp.dot(x * x, std_w * std_w,
                                preferred_element_type=jnp.float32)

    @pl.when(k == pl.num_programs(1) - 1)
    def _finalize():
        std_b = 1e-06 + _softplus(brho_ref[...])     # (1, tn)
        act = (acc_mu_ref[...]
               + jnp.sqrt(acc_var_ref[...]) * epsw_ref[...]
               + (bmu_ref[...] + std_b * epsb_ref[...]))
        out_ref[...] = jnp.tanh(act)


# --------------------------------------------------------------------------
# KLD kernel (x-independent, once per step): scalar result into SMEM.
# Grid = (k: D_in reduction [arbitrary]).  Prior divisions constant-folded.
# --------------------------------------------------------------------------
def _kld_kernel(wmu_ref, wrho_ref, bmu_ref, brho_ref, kld_ref, *,
                d_in, d_out, tk,
                log_sig_w, inv_sig_w2, log_sig_b, inv_sig_b2):
    k = pl.program_id(0)
    dp_out = wmu_ref.shape[1]

    @pl.when(k == 0)
    def _init():
        kld_ref[0] = 0.0

    # Weight term for this D_in tile.
    w_mu = wmu_ref[...]
    std_w = 1e-06 + _softplus(wrho_ref[...])
    term_w = (2.0 * (log_sig_w - jnp.log(std_w)) - 1.0
              + (std_w * std_w + w_mu * w_mu) * inv_sig_w2)
    row = jax.lax.broadcasted_iota(jnp.int32, (tk, dp_out), 0) + k * tk
    col = jax.lax.broadcasted_iota(jnp.int32, (tk, dp_out), 1)
    term_w = jnp.where((row < d_in) & (col < d_out), term_w, 0.0)
    kld_ref[0] += 0.5 * jnp.sum(term_w)

    # Bias term, added exactly once.
    @pl.when(k == 0)
    def _bias():
        b_mu = bmu_ref[...]
        std_b = 1e-06 + _softplus(brho_ref[...])
        term_b = (2.0 * (log_sig_b - jnp.log(std_b)) - 1.0
                  + (std_b * std_b + b_mu * b_mu) * inv_sig_b2)
        colb = jax.lax.broadcasted_iota(jnp.int32, (1, dp_out), 1)
        term_b = jnp.where(colb < d_out, term_b, 0.0)
        kld_ref[0] += 0.5 * jnp.sum(term_b)


# --------------------------------------------------------------------------
# Wrapper
# --------------------------------------------------------------------------
def bayes_weight_layer(x, w_mu, w_rho, b_mu, b_rho, eps_w, eps_b, *,
                       prior_sig, bias_prior_sig=0.1):
    """x: (B, D_in); returns (output (B, D_out), kld scalar)."""
    f32 = jnp.float32
    B, D_in = x.shape
    D_out = w_mu.shape[1]

    # Pad to lane/sublane-dense shapes (zeros are exact no-ops for the math;
    # padded output rows/cols are sliced away, padded KLD entries are masked).
    Bp = _round_up(B, 8)
    Dp_in = _round_up(D_in, 128)
    Dp_out = _round_up(D_out, 128)
    tk = _pick_tile(Dp_in)     # reduction tile (<=512: safe for v7x 64 MiB VMEM)
    tn = _pick_tile(Dp_out)    # output tile (lane-dense, multiple of 128/256)

    xp = jnp.zeros((Bp, Dp_in), f32).at[:B, :D_in].set(x.astype(f32))
    wmup = jnp.zeros((Dp_in, Dp_out), f32).at[:D_in, :D_out].set(w_mu.astype(f32))
    wrhop = jnp.zeros((Dp_in, Dp_out), f32).at[:D_in, :D_out].set(w_rho.astype(f32))
    bmup = jnp.zeros((1, Dp_out), f32).at[0, :D_out].set(b_mu.astype(f32))
    brhop = jnp.zeros((1, Dp_out), f32).at[0, :D_out].set(b_rho.astype(f32))
    epswp = jnp.zeros((Bp, Dp_out), f32).at[:B, :D_out].set(eps_w.astype(f32))
    epsbp = jnp.zeros((1, Dp_out), f32).at[0, :D_out].set(eps_b.astype(f32))

    nj, nk = Dp_out // tn, Dp_in // tk

    out_p = pl.pallas_call(
        _bayes_fwd_kernel,
        out_shape=jax.ShapeDtypeStruct((Bp, Dp_out), f32),
        grid=(nj, nk),
        in_specs=[
            pl.BlockSpec((Bp, tk), lambda j, k: (0, k)),    # x
            pl.BlockSpec((tk, tn), lambda j, k: (k, j)),    # W_mu
            pl.BlockSpec((tk, tn), lambda j, k: (k, j)),    # W_rho
            pl.BlockSpec((1, tn), lambda j, k: (0, j)),     # b_mu
            pl.BlockSpec((1, tn), lambda j, k: (0, j)),     # b_rho
            pl.BlockSpec((Bp, tn), lambda j, k: (0, j)),    # eps_W
            pl.BlockSpec((1, tn), lambda j, k: (0, j)),     # eps_b
        ],
        out_specs=pl.BlockSpec((Bp, tn), lambda j, k: (0, j)),
        scratch_shapes=[pltpu.VMEM((Bp, tn), f32),          # sum x @ W_mu
                        pltpu.VMEM((Bp, tn), f32)],         # sum x^2 @ std_w^2
        compiler_params=pltpu.CompilerParams(
            dimension_semantics=("parallel", "arbitrary")),
    )(xp, wmup, wrhop, bmup, brhop, epswp, epsbp)

    kld_kernel = functools.partial(
        _kld_kernel, d_in=D_in, d_out=D_out, tk=tk,
        log_sig_w=float(math.log(prior_sig)),
        inv_sig_w2=float(1.0 / (prior_sig * prior_sig)),
        log_sig_b=float(math.log(bias_prior_sig)),
        inv_sig_b2=float(1.0 / (bias_prior_sig * bias_prior_sig)))

    kld = pl.pallas_call(
        kld_kernel,
        out_shape=jax.ShapeDtypeStruct((1,), f32),
        grid=(nk,),
        in_specs=[
            pl.BlockSpec((tk, Dp_out), lambda k: (k, 0)),   # W_mu
            pl.BlockSpec((tk, Dp_out), lambda k: (k, 0)),   # W_rho
            pl.BlockSpec((1, Dp_out), lambda k: (0, 0)),    # b_mu
            pl.BlockSpec((1, Dp_out), lambda k: (0, 0)),    # b_rho
        ],
        out_specs=pl.BlockSpec(memory_space=pltpu.MemorySpace.SMEM),
        compiler_params=pltpu.CompilerParams(
            dimension_semantics=("arbitrary",)),
    )(wmup, wrhop, bmup, brhop)

    return out_p[:B, :D_out], kld[0]


if __name__ == "__main__":
    # Small shapes consistent with the module: a dense Bayesian linear layer.
    B, D_in, D_out = 8, 32, 32
    prior_sig = 0.1

    key = jax.random.PRNGKey(0)
    k_x, k_wmu, k_bmu, k_ew, k_eb = jax.random.split(key, 5)

    # Synthetic parameters matching __init__ distributions:
    #   W_mu, b_mu ~ U(-0.01, 0.01);  W_rho, b_rho = -3.0 (uniform_(-3, -3)).
    x = jax.random.normal(k_x, (B, D_in), dtype=jnp.float32)
    w_mu = jax.random.uniform(k_wmu, (D_in, D_out), jnp.float32, -0.01, 0.01)
    w_rho = jnp.full((D_in, D_out), -3.0, dtype=jnp.float32)
    b_mu = jax.random.uniform(k_bmu, (D_out,), jnp.float32, -0.01, 0.01)
    b_rho = jnp.full((D_out,), -3.0, dtype=jnp.float32)

    # Reparameterization noise (stand-in for the numpy gaussian-block draw).
    eps_w = jax.random.normal(k_ew, (B, D_out), dtype=jnp.float32)
    eps_b = jax.random.normal(k_eb, (D_out,), dtype=jnp.float32)

    out, kld = bayes_weight_layer(
        x, w_mu, w_rho, b_mu, b_rho, eps_w, eps_b, prior_sig=prior_sig)
    jax.block_until_ready((out, kld))

    # Pure-JAX reference check.
    std_w = 1e-06 + jax.nn.softplus(w_rho)
    std_b = 1e-06 + jax.nn.softplus(b_rho)
    ref_out = jnp.tanh(
        x @ w_mu
        + jnp.sqrt((x ** 2) @ (std_w ** 2)) * eps_w
        + (b_mu + std_b * eps_b)[None, :]
    )
    kld_c = lambda sp, mq, sq: 0.5 * jnp.sum(
        2 * jnp.log(sp / sq) - 1 + (sq / sp) ** 2 + (mq / sp) ** 2)
    ref_kld = kld_c(prior_sig, w_mu, std_w) + kld_c(0.1, b_mu, std_b)

    assert out.shape == (B, D_out)
    assert jnp.allclose(out, ref_out, atol=1e-5, rtol=1e-5)
    assert jnp.allclose(kld, ref_kld, atol=1e-2, rtol=1e-4)
    print("KERNEL_OK")
</pallas_src>

<mosaic_0001>
module attributes {stable_mosaic.version = 11 : i64} {
  func.func @_bayes_fwd_kernel(%arg0: i32, %arg1: i32, %arg2: memref<8x128xf32, #tpu.memory_space<vmem>>, %arg3: memref<128x128xf32, #tpu.memory_space<vmem>>, %arg4: memref<128x128xf32, #tpu.memory_space<vmem>>, %arg5: memref<1x128xf32, #tpu.memory_space<vmem>>, %arg6: memref<1x128xf32, #tpu.memory_space<vmem>>, %arg7: memref<8x128xf32, #tpu.memory_space<vmem>>, %arg8: memref<1x128xf32, #tpu.memory_space<vmem>>, %arg9: memref<8x128xf32, #tpu.memory_space<vmem>>, %arg10: memref<8x128xf32, #tpu.memory_space<vmem>>, %arg11: memref<8x128xf32, #tpu.memory_space<vmem>>) attributes {dimension_semantics = [#tpu.dimension_semantics<parallel>, #tpu.dimension_semantics<arbitrary>], iteration_bounds = array<i64: 1, 1>, scalar_prefetch = 0 : i64, scratch_operands = 2 : i64, tpu.core_type = #tpu.core_type<tc>, window_params = [{transform_indices = @transform_0, window_bounds = array<i64: 8, 128>}, {transform_indices = @transform_1, window_bounds = array<i64: 128, 128>}, {transform_indices = @transform_2, window_bounds = array<i64: 128, 128>}, {transform_indices = @transform_3, window_bounds = array<i64: 1, 128>}, {transform_indices = @transform_4, window_bounds = array<i64: 1, 128>}, {transform_indices = @transform_5, window_bounds = array<i64: 8, 128>}, {transform_indices = @transform_6, window_bounds = array<i64: 1, 128>}, {transform_indices = @transform_7, window_bounds = array<i64: 8, 128>}]} {
    %c0_i32 = arith.constant 0 : i32
    %0 = arith.cmpi eq, %arg1, %c0_i32 : i32
    %1 = arith.extui %0 : i1 to i32
    %c0_i32_0 = arith.constant 0 : i32
    %2 = arith.cmpi ne, %1, %c0_i32_0 : i32
    scf.if %2 {
      %cst_20 = arith.constant 0.000000e+00 : f32
      %35 = vector.broadcast %cst_20 : f32 to vector<8x128xf32>
      %c0_21 = arith.constant 0 : index
      %c0_22 = arith.constant 0 : index
      %36 = vector.load %arg10[%c0_21, %c0_22] : memref<8x128xf32, #tpu.memory_space<vmem>>, vector<8x128xf32>
      tpu.vector_store %arg10[%c0_21, %c0_22], %35 {strides = array<i32>} : memref<8x128xf32, #tpu.memory_space<vmem>>, vector<8x128xf32>,
      %cst_23 = arith.constant 0.000000e+00 : f32
      %37 = vector.broadcast %cst_23 : f32 to vector<8x128xf32>
      %c0_24 = arith.constant 0 : index
      %c0_25 = arith.constant 0 : index
      %38 = vector.load %arg11[%c0_24, %c0_25] : memref<8x128xf32, #tpu.memory_space<vmem>>, vector<8x128xf32>
      tpu.vector_store %arg11[%c0_24, %c0_25], %37 {strides = array<i32>} : memref<8x128xf32, #tpu.memory_space<vmem>>, vector<8x128xf32>,
    } else {
    }
    %c0 = arith.constant 0 : index
    %c0_1 = arith.constant 0 : index
    %3 = vector.load %arg2[%c0, %c0_1] : memref<8x128xf32, #tpu.memory_space<vmem>>, vector<8x128xf32>
    %c0_2 = arith.constant 0 : index
    %c0_3 = arith.constant 0 : index
    %4 = vector.load %arg4[%c0_2, %c0_3] : memref<128x128xf32, #tpu.memory_space<vmem>>, vector<128x128xf32>
    %cst = arith.constant 0.000000e+00 : f32
    %5 = vector.broadcast %cst : f32 to vector<128x128xf32>
    %6 = arith.maximumf %4, %5 : vector<128x128xf32>
    %7 = vector.broadcast %cst : f32 to vector<128x128xf32>
    %8 = arith.subf %4, %7 : vector<128x128xf32>
    %9 = arith.cmpf one, %8, %8 : vector<128x128xf32>
    %10 = vector.broadcast %cst : f32 to vector<128x128xf32>
    %11 = arith.addf %4, %10 : vector<128x128xf32>
    %12 = math.absf %8 : vector<128x128xf32>
    %cst_4 = arith.constant 0.000000e+00 : f32
    %13 = vector.broadcast %cst_4 : f32 to vector<128x128xf32>
    %14 = arith.subf %13, %12 : vector<128x128xf32>
    %15 = math.exp %14 : vector<128x128xf32>
    %16 = math.log1p %15 : vector<128x128xf32>
    %17 = arith.addf %6, %16 : vector<128x128xf32>
    %18 = arith.select %9, %11, %17 : vector<128x128xi1>, vector<128x128xf32>
    %cst_5 = arith.constant 9.99999997E-7 : f32
    %19 = vector.broadcast %cst_5 : f32 to vector<128x128xf32>
    %20 = arith.addf %19, %18 : vector<128x128xf32>
    %c0_6 = arith.constant 0 : index
    %c0_7 = arith.constant 0 : index
    %21 = vector.load %arg10[%c0_6, %c0_7] : memref<8x128xf32, #tpu.memory_space<vmem>>, vector<8x128xf32>
    %c0_8 = arith.constant 0 : index
    %c0_9 = arith.constant 0 : index
    %22 = vector.load %arg3[%c0_8, %c0_9] : memref<128x128xf32, #tpu.memory_space<vmem>>, vector<128x128xf32>
    %cst_10 = arith.constant dense<0.000000e+00> : vector<8x128xf32>
    %23 = tpu.matmul %3, %22, %cst_10 {dimension_numbers = #tpu.dot_dimension_numbers<[1], [0], [0], [1], [0, 0, 1, 1], [], []>} : vector<8x128xf32>, vector<128x128xf32>, vector<8x128xf32> -> vector<8x128xf32>
    %24 = arith.addf %21, %23 : vector<8x128xf32>
    %c0_11 = arith.constant 0 : index
    %c0_12 = arith.constant 0 : index
    %25 = vector.load %arg10[%c0_11, %c0_12] : memref<8x128xf32, #tpu.memory_space<vmem>>, vector<8x128xf32>
    tpu.vector_store %arg10[%c0_11, %c0_12], %24 {strides = array<i32>} : memref<8x128xf32, #tpu.memory_space<vmem>>, vector<8x128xf32>,
    %c0_13 = arith.constant 0 : index
    %c0_14 = arith.constant 0 : index
    %26 = vector.load %arg11[%c0_13, %c0_14] : memref<8x128xf32, #tpu.memory_space<vmem>>, vector<8x128xf32>
    %27 = arith.mulf %3, %3 : vector<8x128xf32>
    %28 = arith.mulf %20, %20 : vector<128x128xf32>
    %cst_15 = arith.constant dense<0.000000e+00> : vector<8x128xf32>
    %29 = tpu.matmul %27, %28, %cst_15 {dimension_numbers = #tpu.dot_dimension_numbers<[1], [0], [0], [1], [0, 0, 1, 1], [], []>} : vector<8x128xf32>, vector<128x128xf32>, vector<8x128xf32> -> vector<8x128xf32>
    %30 = arith.addf %26, %29 : vector<8x128xf32>
    %c0_16 = arith.constant 0 : index
    %c0_17 = arith.constant 0 : index
    %31 = vector.load %arg11[%c0_16, %c0_17] : memref<8x128xf32, #tpu.memory_space<vmem>>, vector<8x128xf32>
    tpu.vector_store %arg11[%c0_16, %c0_17], %30 {strides = array<i32>} : memref<8x128xf32, #tpu.memory_space<vmem>>, vector<8x128xf32>,
    %c0_i32_18 = arith.constant 0 : i32
    %32 = arith.cmpi eq, %arg1, %c0_i32_18 : i32
    %33 = arith.extui %32 : i1 to i32
    %c0_i32_19 = arith.constant 0 : i32
    %34 = arith.cmpi ne, %33, %c0_i32_19 : i32
    scf.if %34 {
      %c0_20 = arith.constant 0 : index
      %c0_21 = arith.constant 0 : index
      %35 = vector.load %arg6[%c0_20, %c0_21] : memref<1x128xf32, #tpu.memory_space<vmem>>, vector<1x128xf32>
      %cst_22 = arith.constant 0.000000e+00 : f32
      %36 = vector.broadcast %cst_22 : f32 to vector<1x128xf32>
      %37 = arith.maximumf %35, %36 : vector<1x128xf32>
      %38 = vector.broadcast %cst_22 : f32 to vector<1x128xf32>
      %39 = arith.subf %35, %38 : vector<1x128xf32>
      %40 = arith.cmpf one, %39, %39 : vector<1x128xf32>
      %41 = vector.broadcast %cst_22 : f32 to vector<1x128xf32>
      %42 = arith.addf %35, %41 : vector<1x128xf32>
      %43 = math.absf %39 : vector<1x128xf32>
      %cst_23 = arith.constant 0.000000e+00 : f32
      %44 = vector.broadcast %cst_23 : f32 to vector<1x128xf32>
      %45 = arith.subf %44, %43 : vector<1x128xf32>
      %46 = math.exp %45 : vector<1x128xf32>
      %47 = math.log1p %46 : vector<1x128xf32>
      %48 = arith.addf %37, %47 : vector<1x128xf32>
      %49 = arith.select %40, %42, %48 : vector<1x128xi1>, vector<1x128xf32>
      %cst_24 = arith.constant 9.99999997E-7 : f32
      %50 = vector.broadcast %cst_24 : f32 to vector<1x128xf32>
      %51 = arith.addf %50, %49 : vector<1x128xf32>
      %c0_25 = arith.constant 0 : index
      %c0_26 = arith.constant 0 : index
      %52 = vector.load %arg10[%c0_25, %c0_26] : memref<8x128xf32, #tpu.memory_space<vmem>>, vector<8x128xf32>
      %c0_27 = arith.constant 0 : index
      %c0_28 = arith.constant 0 : index
      %53 = vector.load %arg11[%c0_27, %c0_28] : memref<8x128xf32, #tpu.memory_space<vmem>>, vector<8x128xf32>
      %54 = math.sqrt %53 : vector<8x128xf32>
      %c0_29 = arith.constant 0 : index
      %c0_30 = arith.constant 0 : index
      %55 = vector.load %arg7[%c0_29, %c0_30] : memref<8x128xf32, #tpu.memory_space<vmem>>, vector<8x128xf32>
      %56 = arith.mulf %54, %55 : vector<8x128xf32>
      %57 = arith.addf %52, %56 : vector<8x128xf32>
      %c0_31 = arith.constant 0 : index
      %c0_32 = arith.constant 0 : index
      %58 = vector.load %arg5[%c0_31, %c0_32] : memref<1x128xf32, #tpu.memory_space<vmem>>, vector<1x128xf32>
      %c0_33 = arith.constant 0 : index
      %c0_34 = arith.constant 0 : index
      %59 = vector.load %arg8[%c0_33, %c0_34] : memref<1x128xf32, #tpu.memory_space<vmem>>, vector<1x128xf32>
      %60 = arith.mulf %51, %59 : vector<1x128xf32>
      %61 = arith.addf %58, %60 : vector<1x128xf32>
      %62 = vector.broadcast %61 : vector<1x128xf32> to vector<8x128xf32>
      %63 = arith.addf %57, %62 : vector<8x128xf32>
      %64 = math.tanh %63 : vector<8x128xf32>
      %c0_35 = arith.constant 0 : index
      %c0_36 = arith.constant 0 : index
      %65 = vector.load %arg9[%c0_35, %c0_36] : memref<8x128xf32, #tpu.memory_space<vmem>>, vector<8x128xf32>
      tpu.vector_store %arg9[%c0_35, %c0_36], %64 {strides = array<i32>} : memref<8x128xf32, #tpu.memory_space<vmem>>, vector<8x128xf32>,
    } else {
    }
    return
  }
  func.func @transform_0(%arg0: i32, %arg1: i32) -> (i32, i32) {
    %c0_i32 = arith.constant 0 : i32
    %c0_i32_0 = arith.constant 0 : i32
    return %c0_i32, %arg1 : i32, i32
  }
  func.func @transform_1(%arg0: i32, %arg1: i32) -> (i32, i32) {
    %c0_i32 = arith.constant 0 : i32
    return %arg1, %arg0 : i32, i32
  }
  func.func @transform_2(%arg0: i32, %arg1: i32) -> (i32, i32) {
    %c0_i32 = arith.constant 0 : i32
    return %arg1, %arg0 : i32, i32
  }
  func.func @transform_3(%arg0: i32, %arg1: i32) -> (i32, i32) {
    %c0_i32 = arith.constant 0 : i32
    %c0_i32_0 = arith.constant 0 : i32
    return %c0_i32, %arg0 : i32, i32
  }
  func.func @transform_4(%arg0: i32, %arg1: i32) -> (i32, i32) {
    %c0_i32 = arith.constant 0 : i32
    %c0_i32_0 = arith.constant 0 : i32
    return %c0_i32, %arg0 : i32, i32
  }
  func.func @transform_5(%arg0: i32, %arg1: i32) -> (i32, i32) {
    %c0_i32 = arith.constant 0 : i32
    %c0_i32_0 = arith.constant 0 : i32
    return %c0_i32, %arg0 : i32, i32
  }
  func.func @transform_6(%arg0: i32, %arg1: i32) -> (i32, i32) {
    %c0_i32 = arith.constant 0 : i32
    %c0_i32_0 = arith.constant 0 : i32
    return %c0_i32, %arg0 : i32, i32
  }
  func.func @transform_7(%arg0: i32, %arg1: i32) -> (i32, i32) {
    %c0_i32 = arith.constant 0 : i32
    %c0_i32_0 = arith.constant 0 : i32
    return %c0_i32, %arg0 : i32, i32
  }
}

</mosaic_0001>

<llo_original>
// kernel: tpu_custom_call.1
$region0: #{tpu_custom_call.1}
  #allocation0 [shape = 'u32[]', space=smem, size = 0x4, offset = 0x4, fixed_abs, tag = 'smem constant byte address 0x4 - core index']
  #allocation1 [shape = 'u32[72,128]{1,0:T(1,128)}', space=vmem, size = 0x9000, scoped, tag = 'internal scratch']
  #allocation2 [shape = 'f32[8,128]{1,0:T(8,128)}', space=vmem, size = 0x1000, scoped, tag = 'scratch operand']
  #allocation3 [shape = 'f32[8,128]{1,0:T(8,128)}', space=vmem, size = 0x1000, scoped, tag = 'scratch operand']
  %s0 = inlined_call_operand.hbm [shape: f32[8,128], index: 0, kind: input, shape index: {}]
  %s1 = inlined_call_operand.hbm [shape: f32[128,128], index: 1, kind: input, shape index: {}]
  %s2 = inlined_call_operand.hbm [shape: f32[128,128], index: 2, kind: input, shape index: {}]
  %s3 = inlined_call_operand.vmem [shape: f32[1,128], index: 3, kind: input, shape index: {}]
  %s4 = inlined_call_operand.vmem [shape: f32[1,128], index: 4, kind: input, shape index: {}]
  %s5 = inlined_call_operand.hbm [shape: f32[8,128], index: 5, kind: input, shape index: {}]
  %s6 = inlined_call_operand.vmem [shape: f32[1,128], index: 6, kind: input, shape index: {}]
  %s7 = inlined_call_operand.hbm [shape: f32[8,128], index: 7, kind: output, shape index: {}]
  %s8 = sld [smem:[#allocation0]]
  $region62: #{tpu_custom_call.1} parent=0
    _
  %s10 = ssub.s32 1, %s8
  %s11 = scalar_select 0, %s10, %s8
  $region1: #{tpu_custom_call.1} parent=0
    #allocation4 [shape = 'u8[4096]{0}', space=vmem, size = 0x1000, scoped, tag = 'input window, operand 0, single buffered']
    #allocation5 [shape = 's32[1]{0}', space=sflag, size = 0x4, scoped, tag = 'scoped memory for tpu_custom_call.1']
    #allocation6 [shape = 's32[1]{0}', space=sflag, size = 0x4, scoped, tag = 'scoped memory for tpu_custom_call.1']
    #allocation7 [shape = 'u8[65536]{0}', space=vmem, size = 0x10000, scoped, tag = 'input window, operand 1, single buffered']
    #allocation8 [shape = 's32[1]{0}', space=sflag, size = 0x4, scoped, tag = 'scoped memory for tpu_custom_call.1']
    #allocation9 [shape = 'u8[65536]{0}', space=vmem, size = 0x10000, scoped, tag = 'input window, operand 2, single buffered']
    #allocation10 [shape = 'u8[4096]{0}', space=vmem, size = 0x1000, scoped, tag = 'input window, operand 5, single buffered']
    #allocation11 [shape = 's32[1]{0}', space=sflag, size = 0x4, scoped, tag = 'scoped memory for tpu_custom_call.1']
    #allocation12 [shape = 'u8[4096]{0}', space=vmem, size = 0x1000, scoped, tag = 'output window, operand 0, single buffered']
    %12 = vsyncpa [#allocation5], 0
    %13 = vsyncpa [#allocation8], 0
    %14 = vsyncpa [#allocation11], 0
    %15 = vsyncpa [#allocation6], 0
    // Predicated region
    $region2: #{tpu_custom_call.1} parent=1 // pred_check
      _
    $region3: #{tpu_custom_call.1} parent=1 // pred_check_branch
      %17 = sbr.rel (0) target = $region5
    $region4: #{tpu_custom_call.1} parent=1 // pred_region
      %19 = vsyncadd [#allocation5], 0
      %s21 = sshll.u32 %s0, 4
      %s22 = int_to_ptr.hbm [resolvable:$true] %s21
      %s23 = sshll.u32 [#allocation4], 4
      %s24 = int_to_ptr.vmem [resolvable:$true] %s23
      %26 = dma.hbm_to_vmem [thread:$0]  %s22, 128, %s24, [#allocation5]
    $region5: #{tpu_custom_call.1} parent=1 // pred_fallthru
      _
    // Predicated region
    $region6: #{tpu_custom_call.1} parent=1 // pred_check
      _
    $region7: #{tpu_custom_call.1} parent=1 // pred_check_branch
      %28 = sbr.rel (0) target = $region9
    $region8: #{tpu_custom_call.1} parent=1 // pred_region
      %30 = vsyncadd [#allocation8], 0
      %s31 = sshll.u32 %s1, 4
      %s32 = int_to_ptr.hbm [resolvable:$true] %s31
      %s33 = sshll.u32 [#allocation7], 4
      %s34 = int_to_ptr.vmem [resolvable:$true] %s33
      %39 = dma.hbm_to_vmem [thread:$0]  %s32, 2048, %s34, [#allocation8], 128, 128, 8
    $region9: #{tpu_custom_call.1} parent=1 // pred_fallthru
      _
    // Predicated region
    $region10: #{tpu_custom_call.1} parent=1 // pred_check
      _
    $region11: #{tpu_custom_call.1} parent=1 // pred_check_branch
      %41 = sbr.rel (0) target = $region13
    $region12: #{tpu_custom_call.1} parent=1 // pred_region
      %43 = vsyncadd [#allocation8], 0
      %s44 = sshll.u32 %s2, 4
      %s45 = int_to_ptr.hbm [resolvable:$true] %s44
      %s46 = sshll.u32 [#allocation9], 4
      %s47 = int_to_ptr.vmem [resolvable:$true] %s46
      %52 = dma.hbm_to_vmem [thread:$0]  %s45, 2048, %s47, [#allocation8], 128, 128, 8
    $region13: #{tpu_custom_call.1} parent=1 // pred_fallthru
      _
    // Predicated region
    $region14: #{tpu_custom_call.1} parent=1 // pred_check
      _
    $region15: #{tpu_custom_call.1} parent=1 // pred_check_branch
      %54 = sbr.rel (0) target = $region17
    $region16: #{tpu_custom_call.1} parent=1 // pred_region
      _
    $region17: #{tpu_custom_call.1} parent=1 // pred_fallthru
      _
    // Predicated region
    $region18: #{tpu_custom_call.1} parent=1 // pred_check
      _
    $region19: #{tpu_custom_call.1} parent=1 // pred_check_branch
      %56 = sbr.rel (0) target = $region21
    $region20: #{tpu_custom_call.1} parent=1 // pred_region
      _
    $region21: #{tpu_custom_call.1} parent=1 // pred_fallthru
      _
    // Predicated region
    $region22: #{tpu_custom_call.1} parent=1 // pred_check
      _
    $region23: #{tpu_custom_call.1} parent=1 // pred_check_branch
      %58 = sbr.rel (0) target = $region25
    $region24: #{tpu_custom_call.1} parent=1 // pred_region
      %60 = vsyncadd [#allocation11], 0
      %s62 = sshll.u32 %s5, 4
      %s63 = int_to_ptr.hbm [resolvable:$true] %s62
      %s64 = sshll.u32 [#allocation10], 4
      %s65 = int_to_ptr.vmem [resolvable:$true] %s64
      %67 = dma.hbm_to_vmem [thread:$0]  %s63, 128, %s65, [#allocation11]
    $region25: #{tpu_custom_call.1} parent=1 // pred_fallthru
      _
    // Predicated region
    $region26: #{tpu_custom_call.1} parent=1 // pred_check
      _
    $region27: #{tpu_custom_call.1} parent=1 // pred_check_branch
      %69 = sbr.rel (0) target = $region29
    $region28: #{tpu_custom_call.1} parent=1 // pred_region
      _
    $region29: #{tpu_custom_call.1} parent=1 // pred_fallthru
      _
    // Predicated region
    $region30: #{tpu_custom_call.1} parent=1 // pred_check
      _
    $region31: #{tpu_custom_call.1} parent=1 // pred_check_branch
      %71 = sbr.rel (0) target = $region33
    $region32: #{tpu_custom_call.1} parent=1 // pred_region
      %73 = dma.done [#allocation5], 128
    $region33: #{tpu_custom_call.1} parent=1 // pred_fallthru
      _
    // Predicated region
    $region34: #{tpu_custom_call.1} parent=1 // pred_check
      _
    $region35: #{tpu_custom_call.1} parent=1 // pred_check_branch
      %75 = sbr.rel (0) target = $region37
    $region36: #{tpu_custom_call.1} parent=1 // pred_region
      %77 = dma.done [#allocation8], 2048
    $region37: #{tpu_custom_call.1} parent=1 // pred_fallthru
      _
    // Predicated region
    $region38: #{tpu_custom_call.1} parent=1 // pred_check
      _
    $region39: #{tpu_custom_call.1} parent=1 // pred_check_branch
      %79 = sbr.rel (0) target = $region41
    $region40: #{tpu_custom_call.1} parent=1 // pred_region
      %81 = dma.done [#allocation8], 2048
    $region41: #{tpu_custom_call.1} parent=1 // pred_fallthru
      _
    // Predicated region
    $region42: #{tpu_custom_call.1} parent=1 // pred_check
      _
    $region43: #{tpu_custom_call.1} parent=1 // pred_check_branch
      %83 = sbr.rel (0) target = $region45
    $region44: #{tpu_custom_call.1} parent=1 // pred_region
      %85 = dma.done [#allocation11], 128
    $region45: #{tpu_custom_call.1} parent=1 // pred_fallthru
      _
    %p86 = scmp.eq.s32.totalorder 0, 0
    // Predicated region
    $region46: #{tpu_custom_call.1} parent=1 // pred_check
      %p87 = pneg %p86
    $region47: #{tpu_custom_call.1} parent=1 // pred_check_branch
      %89 = sbr.rel (%p87) target = $region49
    $region48: #{tpu_custom_call.1} parent=1 // pred_region
      %90 = vst [vmem:[#allocation2] sm:$0xff] 0.0
      %91 = vst [vmem:[#allocation3] sm:$0xff] 0.0
    $region49: #{tpu_custom_call.1} parent=1 // pred_fallthru
      _
    %v92 = vld [vmem:[#allocation4] sm:$0xff]
    %v93 = vld [vmem:[#allocation9] sm:$0xff]
    %v94 = vld [vmem:[#allocation9 + $0x8] sm:$0xff]
    %v95 = vld [vmem:[#allocation9 + $0x10] sm:$0xff]
    %v96 = vld [vmem:[#allocation9 + $0x18] sm:$0xff]
    %v97 = vld [vmem:[#allocation9 + $0x20] sm:$0xff]
    %v98 = vld [vmem:[#allocation9 + $0x28] sm:$0xff]
    %v99 = vld [vmem:[#allocation9 + $0x30] sm:$0xff]
    %v100 = vld [vmem:[#allocation9 + $0x38] sm:$0xff]
    %v101 = vld [vmem:[#allocation9 + $0x40] sm:$0xff]
    %v102 = vld [vmem:[#allocation9 + $0x48] sm:$0xff]
    %v103 = vld [vmem:[#allocation9 + $0x50] sm:$0xff]
    %v104 = vld [vmem:[#allocation9 + $0x58] sm:$0xff]
    %v105 = vld [vmem:[#allocation9 + $0x60] sm:$0xff]
    %v106 = vld [vmem:[#allocation9 + $0x68] sm:$0xff]
    %v107 = vld [vmem:[#allocation9 + $0x70] sm:$0xff]
    %v108 = vld [vmem:[#allocation9 + $0x78] sm:$0xff]
    %v109 = vmax.f32 %v93, 0.0
    %v110 = vmax.f32 %v94, 0.0
    %v111 = vmax.f32 %v95, 0.0
    %v112 = vmax.f32 %v96, 0.0
    %v113 = vmax.f32 %v97, 0.0
    %v114 = vmax.f32 %v98, 0.0
    %v115 = vmax.f32 %v99, 0.0
    %v116 = vmax.f32 %v100, 0.0
    %v117 = vmax.f32 %v101, 0.0
    %v118 = vmax.f32 %v102, 0.0
    %v119 = vmax.f32 %v103, 0.0
    %v120 = vmax.f32 %v104, 0.0
    %v121 = vmax.f32 %v105, 0.0
    %v122 = vmax.f32 %v106, 0.0
    %v123 = vmax.f32 %v107, 0.0
    %v124 = vmax.f32 %v108, 0.0
    %vm125 = vcmp.ne.f32.partialorder %v93, %v93
    %vm126 = vcmp.ne.f32.partialorder %v94, %v94
    %vm127 = vcmp.ne.f32.partialorder %v95, %v95
    %vm128 = vcmp.ne.f32.partialorder %v96, %v96
    %vm129 = vcmp.ne.f32.partialorder %v97, %v97
    %vm130 = vcmp.ne.f32.partialorder %v98, %v98
    %vm131 = vcmp.ne.f32.partialorder %v99, %v99
    %vm132 = vcmp.ne.f32.partialorder %v100, %v100
    %vm133 = vcmp.ne.f32.partialorder %v101, %v101
    %vm134 = vcmp.ne.f32.partialorder %v102, %v102
    %vm135 = vcmp.ne.f32.partialorder %v103, %v103
    %vm136 = vcmp.ne.f32.partialorder %v104, %v104
    %vm137 = vcmp.ne.f32.partialorder %v105, %v105
    %vm138 = vcmp.ne.f32.partialorder %v106, %v106
    %vm139 = vcmp.ne.f32.partialorder %v107, %v107
    %vm140 = vcmp.ne.f32.partialorder %v108, %v108
    %v141 = vadd.f32 %v93, 0.0
    %v142 = vadd.f32 %v94, 0.0
    %v143 = vadd.f32 %v95, 0.0
    %v144 = vadd.f32 %v96, 0.0
    %v145 = vadd.f32 %v97, 0.0
    %v146 = vadd.f32 %v98, 0.0
    %v147 = vadd.f32 %v99, 0.0
    %v148 = vadd.f32 %v100, 0.0
    %v149 = vadd.f32 %v101, 0.0
    %v150 = vadd.f32 %v102, 0.0
    %v151 = vadd.f32 %v103, 0.0
    %v152 = vadd.f32 %v104, 0.0
    %v153 = vadd.f32 %v105, 0.0
    %v154 = vadd.f32 %v106, 0.0
    %v155 = vadd.f32 %v107, 0.0
    %v156 = vadd.f32 %v108, 0.0
    %v157 = vand.u32 2147483647, %v93
    %v158 = vand.u32 2147483647, %v94
    %v159 = vand.u32 2147483647, %v95
    %v160 = vand.u32 2147483647, %v96
    %v161 = vand.u32 2147483647, %v97
    %v162 = vand.u32 2147483647, %v98
    %v163 = vand.u32 2147483647, %v99
    %v164 = vand.u32 2147483647, %v100
    %v165 = vand.u32 2147483647, %v101
    %v166 = vand.u32 2147483647, %v102
    %v167 = vand.u32 2147483647, %v103
    %v168 = vand.u32 2147483647, %v104
    %v169 = vand.u32 2147483647, %v105
    %v170 = vand.u32 2147483647, %v106
    %v171 = vand.u32 2147483647, %v107
    %v172 = vand.u32 2147483647, %v108
    %v173 = vsub.f32 0.0, %v157
    %v174 = vsub.f32 0.0, %v158
    %v175 = vsub.f32 0.0, %v159
    %v176 = vsub.f32 0.0, %v160
    %v177 = vsub.f32 0.0, %v161
    %v178 = vsub.f32 0.0, %v162
    %v179 = vsub.f32 0.0, %v163
    %v180 = vsub.f32 0.0, %v164
    %v181 = vsub.f32 0.0, %v165
    %v182 = vsub.f32 0.0, %v166
    %v183 = vsub.f32 0.0, %v167
    %v184 = vsub.f32 0.0, %v168
    %v185 = vsub.f32 0.0, %v169
    %v186 = vsub.f32 0.0, %v170
    %v187 = vsub.f32 0.0, %v171
    %v188 = vsub.f32 0.0, %v172
    %v189 = vmul.f32 %v173, 1.442695
    %v190 = vpow.pop %v189
    %v191 = vmul.f32 %v174, 1.442695
    %v192 = vpow.pop %v191
    %v193 = vmul.f32 %v175, 1.442695
    %v194 = vpow.pop %v193
    %v195 = vmul.f32 %v176, 1.442695
    %v196 = vpow.pop %v195
    %v197 = vmul.f32 %v177, 1.442695
    %v198 = vpow.pop %v197
    %v199 = vmul.f32 %v178, 1.442695
    %v200 = vpow.pop %v199
    %v201 = vmul.f32 %v179, 1.442695
    %v202 = vpow.pop %v201
    %v203 = vmul.f32 %v180, 1.442695
    %v204 = vpow.pop %v203
    %v205 = vmul.f32 %v181, 1.442695
    %v206 = vpow.pop %v205
    %v207 = vmul.f32 %v182, 1.442695
    %v208 = vpow.pop %v207
    %v209 = vmul.f32 %v183, 1.442695
    %v210 = vpow.pop %v209
    %v211 = vmul.f32 %v184, 1.442695
    %v212 = vpow.pop %v211
    %v213 = vmul.f32 %v185, 1.442695
    %v214 = vpow.pop %v213
    %v215 = vmul.f32 %v186, 1.442695
    %v216 = vpow.pop %v215
    %v217 = vmul.f32 %v187, 1.442695
    %v218 = vpow.pop %v217
    %v219 = vmul.f32 %v188, 1.442695
    %v220 = vpow.pop %v219
    %v221 = vadd.f32 %v190, 1.0
    %v222 = vlog2.pop %v221
    %v223 = vmul.f32 %v222, 0.6931472
    %v224 = vmul.f32 -0.5, %v190
    %v225 = vadd.f32 %v224, 1.0
    %v226 = vmul.f32 %v225, %v190
    %v227 = vand.u32 2147483647, %v190
    %vm228 = vcmp.lt.f32.partialorder %v227, 0.0004427343
    %v229 = vsel %vm228, %v226, %v223
    %v230 = vadd.f32 %v192, 1.0
    %v231 = vlog2.pop %v230
    %v232 = vmul.f32 %v231, 0.6931472
    %v233 = vmul.f32 -0.5, %v192
    %v234 = vadd.f32 %v233, 1.0
    %v235 = vmul.f32 %v234, %v192
    %v236 = vand.u32 2147483647, %v192
    %vm237 = vcmp.lt.f32.partialorder %v236, 0.0004427343
    %v238 = vsel %vm237, %v235, %v232
    %v239 = vadd.f32 %v194, 1.0
    %v240 = vlog2.pop %v239
    %v241 = vmul.f32 %v240, 0.6931472
    %v242 = vmul.f32 -0.5, %v194
    %v243 = vadd.f32 %v242, 1.0
    %v244 = vmul.f32 %v243, %v194
    %v245 = vand.u32 2147483647, %v194
    %vm246 = vcmp.lt.f32.partialorder %v245, 0.0004427343
    %v247 = vsel %vm246, %v244, %v241
    %v248 = vadd.f32 %v196, 1.0
    %v249 = vlog2.pop %v248
    %v250 = vmul.f32 %v249, 0.6931472
    %v251 = vmul.f32 -0.5, %v196
    %v252 = vadd.f32 %v251, 1.0
    %v253 = vmul.f32 %v252, %v196
    %v254 = vand.u32 2147483647, %v196
    %vm255 = vcmp.lt.f32.partialorder %v254, 0.0004427343
    %v256 = vsel %vm255, %v253, %v250
    %v257 = vadd.f32 %v198, 1.0
    %v258 = vlog2.pop %v257
    %v259 = vmul.f32 %v258, 0.6931472
    %v260 = vmul.f32 -0.5, %v198
    %v261 = vadd.f32 %v260, 1.0
    %v262 = vmul.f32 %v261, %v198
    %v263 = vand.u32 2147483647, %v198
    %vm264 = vcmp.lt.f32.partialorder %v263, 0.0004427343
    %v265 = vsel %vm264, %v262, %v259
    %v266 = vadd.f32 %v200, 1.0
    %v267 = vlog2.pop %v266
    %v268 = vmul.f32 %v267, 0.6931472
    %v269 = vmul.f32 -0.5, %v200
    %v270 = vadd.f32 %v269, 1.0
    %v271 = vmul.f32 %v270, %v200
    %v272 = vand.u32 2147483647, %v200
    %vm273 = vcmp.lt.f32.partialorder %v272, 0.0004427343
    %v274 = vsel %vm273, %v271, %v268
    %v275 = vadd.f32 %v202, 1.0
    %v276 = vlog2.pop %v275
    %v277 = vmul.f32 %v276, 0.6931472
    %v278 = vmul.f32 -0.5, %v202
    %v279 = vadd.f32 %v278, 1.0
    %v280 = vmul.f32 %v279, %v202
    %v281 = vand.u32 2147483647, %v202
    %vm282 = vcmp.lt.f32.partialorder %v281, 0.0004427343
    %v283 = vsel %vm282, %v280, %v277
    %v284 = vadd.f32 %v204, 1.0
    %v285 = vlog2.pop %v284
    %v286 = vmul.f32 %v285, 0.6931472
    %v287 = vmul.f32 -0.5, %v204
    %v288 = vadd.f32 %v287, 1.0
    %v289 = vmul.f32 %v288, %v204
    %v290 = vand.u32 2147483647, %v204
    %vm291 = vcmp.lt.f32.partialorder %v290, 0.0004427343
    %v292 = vsel %vm291, %v289, %v286
    %v293 = vadd.f32 %v206, 1.0
    %v294 = vlog2.pop %v293
    %v295 = vmul.f32 %v294, 0.6931472
    %v296 = vmul.f32 -0.5, %v206
    %v297 = vadd.f32 %v296, 1.0
    %v298 = vmul.f32 %v297, %v206
    %v299 = vand.u32 2147483647, %v206
    %vm300 = vcmp.lt.f32.partialorder %v299, 0.0004427343
    %v301 = vsel %vm300, %v298, %v295
    %v302 = vadd.f32 %v208, 1.0
    %v303 = vlog2.pop %v302
    %v304 = vmul.f32 %v303, 0.6931472
    %v305 = vmul.f32 -0.5, %v208
    %v306 = vadd.f32 %v305, 1.0
    %v307 = vmul.f32 %v306, %v208
    %v308 = vand.u32 2147483647, %v208
    %vm309 = vcmp.lt.f32.partialorder %v308, 0.0004427343
    %v310 = vsel %vm309, %v307, %v304
    %v311 = vadd.f32 %v210, 1.0
    %v312 = vlog2.pop %v311
    %v313 = vmul.f32 %v312, 0.6931472
    %v314 = vmul.f32 -0.5, %v210
    %v315 = vadd.f32 %v314, 1.0
    %v316 = vmul.f32 %v315, %v210
    %v317 = vand.u32 2147483647, %v210
    %vm318 = vcmp.lt.f32.partialorder %v317, 0.0004427343
    %v319 = vsel %vm318, %v316, %v313
    %v320 = vadd.f32 %v212, 1.0
    %v321 = vlog2.pop %v320
    %v322 = vmul.f32 %v321, 0.6931472
    %v323 = vmul.f32 -0.5, %v212
    %v324 = vadd.f32 %v323, 1.0
    %v325 = vmul.f32 %v324, %v212
    %v326 = vand.u32 2147483647, %v212
    %vm327 = vcmp.lt.f32.partialorder %v326, 0.0004427343
    %v328 = vsel %vm327, %v325, %v322
    %v329 = vadd.f32 %v214, 1.0
    %v330 = vlog2.pop %v329
    %v331 = vmul.f32 %v330, 0.6931472
    %v332 = vmul.f32 -0.5, %v214
    %v333 = vadd.f32 %v332, 1.0
    %v334 = vmul.f32 %v333, %v214
    %v335 = vand.u32 2147483647, %v214
    %vm336 = vcmp.lt.f32.partialorder %v335, 0.0004427343
    %v337 = vsel %vm336, %v334, %v331
    %v338 = vadd.f32 %v216, 1.0
    %v339 = vlog2.pop %v338
    %v340 = vmul.f32 %v339, 0.6931472
    %v341 = vmul.f32 -0.5, %v216
    %v342 = vadd.f32 %v341, 1.0
    %v343 = vmul.f32 %v342, %v216
    %v344 = vand.u32 2147483647, %v216
    %vm345 = vcmp.lt.f32.partialorder %v344, 0.0004427343
    %v346 = vsel %vm345, %v343, %v340
    %v347 = vadd.f32 %v218, 1.0
    %v348 = vlog2.pop %v347
    %v349 = vmul.f32 %v348, 0.6931472
    %v350 = vmul.f32 -0.5, %v218
    %v351 = vadd.f32 %v350, 1.0
    %v352 = vmul.f32 %v351, %v218
    %v353 = vand.u32 2147483647, %v218
    %vm354 = vcmp.lt.f32.partialorder %v353, 0.0004427343
    %v355 = vsel %vm354, %v352, %v349
    %v356 = vadd.f32 %v220, 1.0
    %v357 = vlog2.pop %v356
    %v358 = vmul.f32 %v357, 0.6931472
    %v359 = vmul.f32 -0.5, %v220
    %v360 = vadd.f32 %v359, 1.0
    %v361 = vmul.f32 %v360, %v220
    %v362 = vand.u32 2147483647, %v220
    %vm363 = vcmp.lt.f32.partialorder %v362, 0.0004427343
    %v364 = vsel %vm363, %v361, %v358
    %v365 = vadd.f32 %v109, %v229
    %v366 = vadd.f32 %v110, %v238
    %v367 = vadd.f32 %v111, %v247
    %v368 = vadd.f32 %v112, %v256
    %v369 = vadd.f32 %v113, %v265
    %v370 = vadd.f32 %v114, %v274
    %v371 = vadd.f32 %v115, %v283
    %v372 = vadd.f32 %v116, %v292
    %v373 = vadd.f32 %v117, %v301
    %v374 = vadd.f32 %v118, %v310
    %v375 = vadd.f32 %v119, %v319
    %v376 = vadd.f32 %v120, %v328
    %v377 = vadd.f32 %v121, %v337
    %v378 = vadd.f32 %v122, %v346
    %v379 = vadd.f32 %v123, %v355
    %v380 = vadd.f32 %v124, %v364
    %v381 = vsel %vm125, %v141, %v365
    %v382 = vsel %vm126, %v142, %v366
    %v383 = vsel %vm127, %v143, %v367
    %v384 = vsel %vm128, %v144, %v368
    %v385 = vsel %vm129, %v145, %v369
    %v386 = vsel %vm130, %v146, %v370
    %v387 = vsel %vm131, %v147, %v371
    %v388 = vsel %vm132, %v148, %v372
    %v389 = vsel %vm133, %v149, %v373
    %v390 = vsel %vm134, %v150, %v374
    %v391 = vsel %vm135, %v151, %v375
    %v392 = vsel %vm136, %v152, %v376
    %v393 = vsel %vm137, %v153, %v377
    %v394 = vsel %vm138, %v154, %v378
    %v395 = vsel %vm139, %v155, %v379
    %v396 = vsel %vm140, %v156, %v380
    %v397 = vadd.f32 %v381, 1e-06
    %v398 = vadd.f32 %v382, 1e-06
    %v399 = vadd.f32 %v383, 1e-06
    %v400 = vadd.f32 %v384, 1e-06
    %v401 = vadd.f32 %v385, 1e-06
    %v402 = vadd.f32 %v386, 1e-06
    %v403 = vadd.f32 %v387, 1e-06
    %v404 = vadd.f32 %v388, 1e-06
    %v405 = vadd.f32 %v389, 1e-06
    %v406 = vadd.f32 %v390, 1e-06
    %v407 = vadd.f32 %v391, 1e-06
    %v408 = vadd.f32 %v392, 1e-06
    %v409 = vadd.f32 %v393, 1e-06
    %v410 = vadd.f32 %v394, 1e-06
    %v411 = vadd.f32 %v395, 1e-06
    %v412 = vadd.f32 %v396, 1e-06
    %v413 = vld [vmem:[#allocation2] sm:$0xff]
    %v414 = vld [vmem:[#allocation7] sm:$0xff]
    %v415 = vld [vmem:[#allocation7 + $0x8] sm:$0xff]
    %v416 = vld [vmem:[#allocation7 + $0x10] sm:$0xff]
    %v417 = vld [vmem:[#allocation7 + $0x18] sm:$0xff]
    %v418 = vld [vmem:[#allocation7 + $0x20] sm:$0xff]
    %v419 = vld [vmem:[#allocation7 + $0x28] sm:$0xff]
    %v420 = vld [vmem:[#allocation7 + $0x30] sm:$0xff]
    %v421 = vld [vmem:[#allocation7 + $0x38] sm:$0xff]
    %v422 = vld [vmem:[#allocation7 + $0x40] sm:$0xff]
    %v423 = vld [vmem:[#allocation7 + $0x48] sm:$0xff]
    %v424 = vld [vmem:[#allocation7 + $0x50] sm:$0xff]
    %v425 = vld [vmem:[#allocation7 + $0x58] sm:$0xff]
    %v426 = vld [vmem:[#allocation7 + $0x60] sm:$0xff]
    %v427 = vld [vmem:[#allocation7 + $0x68] sm:$0xff]
    %v428 = vld [vmem:[#allocation7 + $0x70] sm:$0xff]
    %v429 = vld [vmem:[#allocation7 + $0x78] sm:$0xff]
    %430 = vmatpush.msra.mxu0 %v429
    %431 = vmatpush.msra.mxu0 %v428
    %432 = vmatpush.msra.mxu0 %v427
    %433 = vmatpush.msra.mxu0 %v426
    %434 = vmatpush.msra.mxu0 %v425
    %435 = vmatpush.msra.mxu0 %v424
    %436 = vmatpush.msra.mxu0 %v423
    %437 = vmatpush.msra.mxu0 %v422
    %438 = vmatpush.msra.mxu0 %v421
    %439 = vmatpush.msra.mxu0 %v420
    %440 = vmatpush.msra.mxu0 %v419
    %441 = vmatpush.msra.mxu0 %v418
    %442 = vmatpush.msra.mxu0 %v417
    %443 = vmatpush.msra.mxu0 %v416
    %444 = vmatpush.msra.mxu0 %v415
    %445 = vmatpush.msra.mxu0 %v414
    %446 = vmatmul.f32.gmra.mxu0 %v92
    %v447 = vpop.f32.mrf.mxu0
    %v448 = vadd.f32 0.0, %v447
    %449 = vdwg.mxu0
    %v450 = vadd.f32 %v413, %v448
    %451 = vst [vmem:[#allocation2] sm:$0xff] %v450
    %v452 = vld [vmem:[#allocation3] sm:$0xff]
    %v453 = vmul.f32 %v92, %v92
    %v454 = vmul.f32 %v397, %v397
    %v455 = vmul.f32 %v398, %v398
    %v456 = vmul.f32 %v399, %v399
    %v457 = vmul.f32 %v400, %v400
    %v458 = vmul.f32 %v401, %v401
    %v459 = vmul.f32 %v402, %v402
    %v460 = vmul.f32 %v403, %v403
    %v461 = vmul.f32 %v404, %v404
    %v462 = vmul.f32 %v405, %v405
    %v463 = vmul.f32 %v406, %v406
    %v464 = vmul.f32 %v407, %v407
    %v465 = vmul.f32 %v408, %v408
    %v466 = vmul.f32 %v409, %v409
    %v467 = vmul.f32 %v410, %v410
    %v468 = vmul.f32 %v411, %v411
    %v469 = vmul.f32 %v412, %v412
    %470 = vmatpush.msra.mxu0 %v469
    %471 = vmatpush.msra.mxu0 %v468
    %472 = vmatpush.msra.mxu0 %v467
    %473 = vmatpush.msra.mxu0 %v466
    %474 = vmatpush.msra.mxu0 %v465
    %475 = vmatpush.msra.mxu0 %v464
    %476 = vmatpush.msra.mxu0 %v463
    %477 = vmatpush.msra.mxu0 %v462
    %478 = vmatpush.msra.mxu0 %v461
    %479 = vmatpush.msra.mxu0 %v460
    %480 = vmatpush.msra.mxu0 %v459
    %481 = vmatpush.msra.mxu0 %v458
    %482 = vmatpush.msra.mxu0 %v457
    %483 = vmatpush.msra.mxu0 %v456
    %484 = vmatpush.msra.mxu0 %v455
    %485 = vmatpush.msra.mxu0 %v454
    %486 = vmatmul.f32.gmra.mxu0 %v453
    %v487 = vpop.f32.mrf.mxu0
    %v488 = vadd.f32 0.0, %v487
    %489 = vdwg.mxu0
    %v490 = vadd.f32 %v452, %v488
    %491 = vst [vmem:[#allocation3] sm:$0xff] %v490
    // Predicated region
    $region50: #{tpu_custom_call.1} parent=1 // pred_check
      %p492 = pneg %p86
    $region51: #{tpu_custom_call.1} parent=1 // pred_check_branch
      %494 = sbr.rel (%p492) target = $region53
    $region52: #{tpu_custom_call.1} parent=1 // pred_region
      %v495 = vld [vmem:[%s4] sm:$0x1]
      %v496 = vmax.f32 %v495, 0.0
      %vm497 = vcmp.ne.f32.partialorder %v495, %v495
      %v498 = vadd.f32 %v495, 0.0
      %v499 = vand.u32 2147483647, %v495
      %v500 = vsub.f32 0.0, %v499
      %v501 = vmul.f32 %v500, 1.442695
      %v502 = vpow.pop %v501
      %v503 = vadd.f32 %v502, 1.0
      %v504 = vlog2.pop %v503
      %v505 = vmul.f32 %v504, 0.6931472
      %v506 = vmul.f32 -0.5, %v502
      %v507 = vadd.f32 %v506, 1.0
      %v508 = vmul.f32 %v507, %v502
      %v509 = vand.u32 2147483647, %v502
      %vm510 = vcmp.lt.f32.partialorder %v509, 0.0004427343
      %v511 = vsel %vm510, %v508, %v505
      %v512 = vadd.f32 %v496, %v511
      %v513 = vsel %vm497, %v498, %v512
      %v514 = vadd.f32 %v513, 1e-06
      %v515 = vld [vmem:[#allocation2] sm:$0xff]
      %v516 = vld [vmem:[#allocation3] sm:$0xff]
      %v517 = vrsqrt.pop %v516
      %v518 = vmul.f32 %v517, %v516
      %v519 = vmul.f32 %v518, %v517
      %v520 = vmul.f32 0.5, %v519
      %v521 = vsub.f32 1.5, %v520
      %v522 = vmul.f32 %v517, %v521
      %v523 = vmul.f32 %v516, %v522
      %vm524 = vcmp.eq.f32.partialorder %v516, inf
      %v525 = vsel %vm524, %v516, %v523
      %vm526 = vcmp.eq.f32.partialorder %v516, 0.0
      %v527 = vand.u32 %v516, 2147483648
      %v528 = vsel %vm526, %v527, %v525
      %v529 = vld [vmem:[#allocation10] sm:$0xff]
      %v530 = vmul.f32 %v528, %v529
      %v531 = vadd.f32 %v515, %v530
      %v532 = vld [vmem:[%s3] sm:$0x1]
      %v533 = vld [vmem:[%s6] sm:$0x1]
      %v534 = vmul.f32 %v514, %v533
      %v535 = vadd.f32 %v532, %v534
      %v537 = vperm.slane %v535, 0
      %v539 = vadd.f32 %v531, %v537
      %v540 = vtanh.pop %v539
      %541 = vst [vmem:[#allocation12] sm:$0xff] %v540
    $region53: #{tpu_custom_call.1} parent=1 // pred_fallthru
      _
    // Predicated region
    $region54: #{tpu_custom_call.1} parent=1 // pred_check
      _
    $region55: #{tpu_custom_call.1} parent=1 // pred_check_branch
      %543 = sbr.rel (0) target = $region57
    $region56: #{tpu_custom_call.1} parent=1 // pred_region
      %545 = vsyncadd [#allocation6], 0
      %s547 = sshll.u32 [#allocation12], 4
      %s548 = int_to_ptr.vmem [resolvable:$true] %s547
      %s549 = sshll.u32 %s7, 4
      %s550 = int_to_ptr.hbm [resolvable:$true] %s549
      %552 = dma.vmem_to_hbm [thread:$0]  %s548, 128, %s550, [#allocation6]
    $region57: #{tpu_custom_call.1} parent=1 // pred_fallthru
      _
    // Predicated region
    $region58: #{tpu_custom_call.1} parent=1 // pred_check
      _
    $region59: #{tpu_custom_call.1} parent=1 // pred_check_branch
      %554 = sbr.rel (0) target = $region61
    $region60: #{tpu_custom_call.1} parent=1 // pred_region
      %556 = dma.done [#allocation6], 128
    $region61: #{tpu_custom_call.1} parent=1 // pred_fallthru
      _
    %557 = vsyncpa [#allocation5], 1
    %558 = vsyncpa [#allocation8], 1
    %559 = vsyncpa [#allocation11], 1
    %560 = vsyncpa [#allocation6], 1

</llo_original>
